<compile_context>
chip_gen: v7x
topology: tpu7x:2x2x1
jax: 0.10.0
libtpu: 0.0.40
codegen_flags: <defaults>
</compile_context>

<pallas_src>
import functools
import math

import jax
import jax.numpy as jnp
import numpy as np
from jax import lax
from jax.experimental import pallas as pl
from jax.experimental.pallas import tpu as pltpu

_LANES = 128
_CHUNK_ROWS = 512   # rows reduced per inner step -> f32 intermediates <= 256 KiB


def _sparsity_sums_kernel(mdil_ref, mstd_ref, odil_ref, ostd_ref, *,
                          num_layers, rows, rows_tile, tiles_per_core,
                          any_partial, chunk, n_main, rem):
    """Accumulates per-layer, lane-parallel sums of the two mask stacks.

    mdil_ref / mstd_ref : (L, rows_tile, 128) mask tiles (any numeric dtype)
    odil_ref / ostd_ref : (1, L, 128) f32 accumulators (resident across the
                          'arbitrary' row-tile axis; one block per core slot)
    """
    c = pl.program_id(0)   # "parallel" core-split axis
    r = pl.program_id(1)   # "arbitrary" row-tile (reduction) axis

    @pl.when(r == 0)
    def _init():
        odil_ref[...] = jnp.zeros_like(odil_ref)
        ostd_ref[...] = jnp.zeros_like(ostd_ref)

    def _accum_chunk(start_row, nrows, valid):
        # valid is None (full chunk) or a traced count of valid rows in tile.
        if valid is not None:
            row_ids = lax.broadcasted_iota(jnp.int32, (nrows, _LANES), 0) + start_row
            keep = row_ids < valid

        def one_layer(l):
            md = mdil_ref[l, pl.ds(start_row, nrows), :].astype(jnp.float32)
            ms = mstd_ref[l, pl.ds(start_row, nrows), :].astype(jnp.float32)
            if valid is not None:
                md = jnp.where(keep, md, 0.0)
                ms = jnp.where(keep, ms, 0.0)
            odil_ref[0, l, :] += jnp.sum(md, axis=0)
            ostd_ref[0, l, :] += jnp.sum(ms, axis=0)

        if num_layers <= 8:                     # small L: static unroll
            for l in range(num_layers):
                one_layer(l)
        else:                                   # large L: bounded live ranges
            def layer_body(l, carry):
                one_layer(l)
                return carry
            lax.fori_loop(0, num_layers, layer_body, 0)

    def _accum_tile(valid):
        if n_main == 1 and rem == 0:
            _accum_chunk(0, chunk, valid)
            return
        if n_main <= 4:                         # few chunks: static unroll
            for j in range(n_main):
                _accum_chunk(j * chunk, chunk, valid)
        else:
            def chunk_body(j, carry):
                _accum_chunk(pl.multiple_of(j * chunk, chunk), chunk, valid)
                return carry
            lax.fori_loop(0, n_main, chunk_body, 0)
        if rem > 0:
            _accum_chunk(n_main * chunk, rem, valid)

    if not any_partial:
        # Static shapes guarantee every tile is fully in-bounds.
        _accum_tile(None)
    else:
        tile_start = (c * tiles_per_core + r) * rows_tile
        valid = rows - tile_start               # may be <= 0 for duplicate tiles

        @pl.when(valid >= rows_tile)
        def _full_tile():
            _accum_tile(None)

        @pl.when(valid < rows_tile)
        def _partial_tile():
            _accum_tile(valid)


def sparsity_criterion(masks_dil, masks_std, flops, epoch, *,
                       sparsity_target, num_epochs, weight, anneal_speed=0.33):
    """Pallas implementation of SparsityCriterion.forward.

    masks_dil, masks_std : (L, B, H, W) hard masks with values in {0, 1};
                           int8/uint8 recommended (halves HBM traffic).
    flops                : (L, 2) flops_per_position [dilate, std]
    Returns (weighted loss scalar, sparsity_meta dict of scalars).
    """
    L, B, H, W = masks_dil.shape
    N = B * H * W

    # ---- annealing schedule (host-side Python, matches the torch code) ----
    anneal_finish_epoch = anneal_speed * num_epochs
    p = epoch / anneal_finish_epoch
    progress = math.cos(min(max(p, 0.0), 1.0) * (math.pi / 2)) ** 2
    upper_bound = 1.0 - progress * (1.0 - sparsity_target)
    lower_bound = progress * sparsity_target

    # ---- lane-dense (L, rows, 128) layout (free reshape when N % 128 == 0) ----
    if N % _LANES == 0:
        rows = N // _LANES
        mdil = masks_dil.reshape(L, rows, _LANES)
        mstd = masks_std.reshape(L, rows, _LANES)
    else:
        # TODO(synk): avoid this pad copy (manual-DMA / masked tail) when
        # B*H*W is not a multiple of 128.
        rows = -(-N // _LANES)
        pad = rows * _LANES - N
        mdil = jnp.pad(masks_dil.reshape(L, N), ((0, 0), (0, pad))).reshape(L, rows, _LANES)
        mstd = jnp.pad(masks_std.reshape(L, N), ((0, 0), (0, pad))).reshape(L, rows, _LANES)

    dtype_bytes = jnp.dtype(mdil.dtype).itemsize

    # ---- generation-aware VMEM tile budget (2 inputs x 2 pipeline buffers) ----
    try:
        vmem_cap = int(pltpu.get_tpu_info().vmem_capacity_bytes)
    except Exception:
        vmem_cap = 64 * 1024 * 1024          # conservative (v7x per-core VMEM)
    tile_budget = max(4 << 20, min(24 << 20, (vmem_cap * 3) // 8))
    bytes_per_row = 2 * 2 * L * _LANES * dtype_bytes
    max_rows = max(1, tile_budget // bytes_per_row)
    if max_rows >= _CHUNK_ROWS:
        rows_tile = (max_rows // _CHUNK_ROWS) * _CHUNK_ROWS
    else:
        align = max(8, 32 // dtype_bytes)    # int8->32, bf16->16, f32->8 sublanes
        rows_tile = max(align, (max_rows // align) * align)
    if rows <= rows_tile:
        rows_tile = rows                     # single tile: full-dim block

    # In-tile chunking (bounds f32 upcast intermediates).
    if rows_tile <= _CHUNK_ROWS:
        chunk, n_main, rem = rows_tile, 1, 0
    else:
        chunk = _CHUNK_ROWS
        n_main = rows_tile // chunk
        rem = rows_tile - n_main * chunk

    # Grid: leading "parallel" axis splits row tiles across TensorCores (v7x).
    total_tiles = -(-rows // rows_tile)
    num_cores = 2 if total_tiles >= 2 else 1
    tiles_per_core = -(-total_tiles // num_cores)
    any_partial = (num_cores * tiles_per_core * rows_tile != rows)
    last_tile = total_tiles - 1

    kernel = functools.partial(
        _sparsity_sums_kernel, num_layers=L, rows=rows, rows_tile=rows_tile,
        tiles_per_core=tiles_per_core, any_partial=any_partial,
        chunk=chunk, n_main=n_main, rem=rem)

    # Clamp duplicate / overhanging tiles onto the last real tile; the kernel's
    # row mask zeroes any out-of-range contribution.
    mask_spec = pl.BlockSpec(
        (L, rows_tile, _LANES),
        lambda c, r: (0, jnp.minimum(c * tiles_per_core + r, last_tile), 0))
    acc_spec = pl.BlockSpec((1, L, _LANES), lambda c, r: (c, 0, 0))

    bytes_in = 2 * L * rows * _LANES * dtype_bytes
    cost = pl.CostEstimate(
        flops=4 * L * rows * _LANES,                       # cvt + add per element
        transcendentals=0,
        bytes_accessed=bytes_in + 2 * num_cores * L * _LANES * 4)

    acc_dil, acc_std = pl.pallas_call(
        kernel,
        out_shape=(jax.ShapeDtypeStruct((num_cores, L, _LANES), jnp.float32),
                   jax.ShapeDtypeStruct((num_cores, L, _LANES), jnp.float32)),
        grid_spec=pltpu.PrefetchScalarGridSpec(
            num_scalar_prefetch=0,
            grid=(num_cores, tiles_per_core),
            in_specs=[mask_spec, mask_spec],
            out_specs=(acc_spec, acc_spec),
        ),
        compiler_params=pltpu.CompilerParams(
            dimension_semantics=("parallel", "arbitrary"),
            vmem_limit_bytes=int(min(vmem_cap, tile_budget + (16 << 20)))),
        cost_estimate=cost,
    )(mdil, mstd)

    # ---- tiny finalize in plain JAX (O(L) work) ----
    flops = jnp.asarray(flops, jnp.float32)
    f_dil = flops[:, 0]
    f_std = flops[:, 1]
    a_dil = jnp.sum(acc_dil, axis=(0, 2))                  # (L,) active positions
    a_std = jnp.sum(acc_std, axis=(0, 2))                  # (L,)
    total_pos = jnp.float32(N)

    c_layer = a_dil * f_dil + a_std * f_std
    t_layer = total_pos * (f_dil + f_std)
    layer_perc = c_layer / t_layer
    over = jnp.maximum(layer_perc - upper_bound, 0.0)
    under = jnp.maximum(lower_bound - layer_perc, 0.0)
    loss_block = jnp.sum(over * over + under * under) / L
    perc = jnp.sum(c_layer) / jnp.sum(t_layer)
    loss_network = (perc - sparsity_target) ** 2
    loss = weight * (loss_network + loss_block)

    sparsity_meta = {
        "upper_bound": jnp.float32(upper_bound),
        "lower_bound": jnp.float32(lower_bound),
        "cost_perc": perc,
        "loss_sp_block": loss_block,
        "loss_sp_network": loss_network,
    }
    return loss, sparsity_meta


def _reference(masks_dil, masks_std, flops, epoch, *,
               sparsity_target, num_epochs, weight, anneal_speed=0.33):
    """Pure numpy reference mirroring the PyTorch forward."""
    masks_dil = np.asarray(masks_dil, np.float64)
    masks_std = np.asarray(masks_std, np.float64)
    flops = np.asarray(flops, np.float64)
    L, B, H, W = masks_dil.shape
    anneal_finish_epoch = anneal_speed * num_epochs
    p = epoch / anneal_finish_epoch
    progress = math.cos(min(max(p, 0.0), 1.0) * (math.pi / 2)) ** 2
    upper_bound = 1.0 - progress * (1.0 - sparsity_target)
    lower_bound = progress * sparsity_target
    total_pos = float(B * H * W)

    loss_block, cost, total = 0.0, 0.0, 0.0
    for i in range(L):
        c = masks_dil[i].sum() * flops[i, 0] + masks_std[i].sum() * flops[i, 1]
        t = total_pos * flops[i, 0] + total_pos * flops[i, 1]
        layer_perc = c / t
        loss_block += max(0.0, layer_perc - upper_bound) ** 2
        loss_block += max(0.0, lower_bound - layer_perc) ** 2
        cost += c
        total += t
    perc = cost / total
    loss_block /= L
    loss_network = (perc - sparsity_target) ** 2
    return weight * (loss_network + loss_block)


if __name__ == "__main__":
    key = jax.random.PRNGKey(0)
    L, B, H, W = 3, 2, 16, 16

    k_dil, k_std = jax.random.split(key)
    # Hard masks stored as int8 ({0,1} exact) -> half the HBM bytes of bf16.
    masks_dil = jax.random.bernoulli(k_dil, p=0.6, shape=(L, B, H, W)).astype(jnp.int8)
    masks_std = jax.random.bernoulli(k_std, p=0.4, shape=(L, B, H, W)).astype(jnp.int8)

    # Deterministic flops_per_position per layer (dilate conv, std conv).
    flops = jnp.array([[9.0 * 4 * 4, 9.0 * 4 * 4],
                       [9.0 * 8 * 8, 9.0 * 8 * 8],
                       [9.0 * 16 * 16, 9.0 * 16 * 16]], dtype=jnp.float32)

    sparsity_target = 0.5
    num_epochs = 100
    weight = 10.0
    epoch = 12  # mid-anneal

    loss, meta = sparsity_criterion(
        masks_dil, masks_std, flops, epoch,
        sparsity_target=sparsity_target, num_epochs=num_epochs, weight=weight)
    loss = jax.block_until_ready(loss)

    ref = _reference(
        np.array(masks_dil).astype(np.float32),
        np.array(masks_std).astype(np.float32),
        np.array(flops), epoch,
        sparsity_target=sparsity_target, num_epochs=num_epochs, weight=weight)

    assert np.allclose(np.array(loss), ref, rtol=1e-4, atol=1e-5), (loss, ref)
    print("KERNEL_OK")
</pallas_src>

<mosaic_0001>
module attributes {stable_mosaic.version = 11 : i64} {
  func.func @_sparsity_sums_kernel(%arg0: i32, %arg1: i32, %arg2: memref<3x4x128xi8, #tpu.memory_space<vmem>>, %arg3: memref<3x4x128xi8, #tpu.memory_space<vmem>>, %arg4: memref<1x3x128xf32, #tpu.memory_space<vmem>>, %arg5: memref<1x3x128xf32, #tpu.memory_space<vmem>>) attributes {dimension_semantics = [#tpu.dimension_semantics<parallel>, #tpu.dimension_semantics<arbitrary>], iteration_bounds = array<i64: 1, 1>, scalar_prefetch = 0 : i64, scratch_operands = 0 : i64, tpu.core_type = #tpu.core_type<tc>, window_params = [{transform_indices = @transform_0, window_bounds = array<i64: 3, 4, 128>}, {transform_indices = @transform_1, window_bounds = array<i64: 3, 4, 128>}, {transform_indices = @transform_2, window_bounds = array<i64: 1, 3, 128>}, {transform_indices = @transform_3, window_bounds = array<i64: 1, 3, 128>}]} {
    %c0_i32 = arith.constant 0 : i32
    %0 = arith.cmpi eq, %arg1, %c0_i32 : i32
    %1 = arith.extui %0 : i1 to i32
    %c0_i32_0 = arith.constant 0 : i32
    %2 = arith.cmpi ne, %1, %c0_i32_0 : i32
    scf.if %2 {
      %cst_57 = arith.constant 0.000000e+00 : f32
      %63 = vector.broadcast %cst_57 : f32 to vector<1x3x128xf32>
      %c0_58 = arith.constant 0 : index
      %c0_59 = arith.constant 0 : index
      %c0_60 = arith.constant 0 : index
      %64 = vector.load %arg4[%c0_58, %c0_59, %c0_60] : memref<1x3x128xf32, #tpu.memory_space<vmem>>, vector<1x3x128xf32>
      tpu.vector_store %arg4[%c0_58, %c0_59, %c0_60], %63 {strides = array<i32>} : memref<1x3x128xf32, #tpu.memory_space<vmem>>, vector<1x3x128xf32>,
      %cst_61 = arith.constant 0.000000e+00 : f32
      %65 = vector.broadcast %cst_61 : f32 to vector<1x3x128xf32>
      %c0_62 = arith.constant 0 : index
      %c0_63 = arith.constant 0 : index
      %c0_64 = arith.constant 0 : index
      %66 = vector.load %arg5[%c0_62, %c0_63, %c0_64] : memref<1x3x128xf32, #tpu.memory_space<vmem>>, vector<1x3x128xf32>
      tpu.vector_store %arg5[%c0_62, %c0_63, %c0_64], %65 {strides = array<i32>} : memref<1x3x128xf32, #tpu.memory_space<vmem>>, vector<1x3x128xf32>,
    } else {
    }
    %c0 = arith.constant 0 : index
    %c0_1 = arith.constant 0 : index
    %c0_2 = arith.constant 0 : index
    %3 = vector.load %arg2[%c0, %c0_1, %c0_2] : memref<3x4x128xi8, #tpu.memory_space<vmem>>, vector<1x4x128xi8>
    %4 = vector.shape_cast %3 : vector<1x4x128xi8> to vector<4x128xi8>
    %5 = arith.sitofp %4 : vector<4x128xi8> to vector<4x128xf32>
    %c0_3 = arith.constant 0 : index
    %c0_4 = arith.constant 0 : index
    %c0_5 = arith.constant 0 : index
    %6 = vector.load %arg3[%c0_3, %c0_4, %c0_5] : memref<3x4x128xi8, #tpu.memory_space<vmem>>, vector<1x4x128xi8>
    %7 = vector.shape_cast %6 : vector<1x4x128xi8> to vector<4x128xi8>
    %8 = arith.sitofp %7 : vector<4x128xi8> to vector<4x128xf32>
    %c0_6 = arith.constant 0 : index
    %c0_7 = arith.constant 0 : index
    %c0_8 = arith.constant 0 : index
    %9 = vector.load %arg4[%c0_6, %c0_7, %c0_8] : memref<1x3x128xf32, #tpu.memory_space<vmem>>, vector<1x1x128xf32>
    %10 = vector.shape_cast %9 : vector<1x1x128xf32> to vector<128xf32>
    %cst = arith.constant dense<0.000000e+00> : vector<128xf32>
    %11 = vector.multi_reduction <add>, %5, %cst [0] : vector<4x128xf32> to vector<128xf32>
    %12 = arith.addf %10, %11 : vector<128xf32>
    %c0_9 = arith.constant 0 : index
    %c0_10 = arith.constant 0 : index
    %c0_11 = arith.constant 0 : index
    %13 = vector.load %arg4[%c0_9, %c0_10, %c0_11] : memref<1x3x128xf32, #tpu.memory_space<vmem>>, vector<1x1x128xf32>
    %14 = vector.shape_cast %13 : vector<1x1x128xf32> to vector<128xf32>
    %15 = vector.shape_cast %12 : vector<128xf32> to vector<1x1x128xf32>
    tpu.vector_store %arg4[%c0_9, %c0_10, %c0_11], %15 {strides = array<i32>} : memref<1x3x128xf32, #tpu.memory_space<vmem>>, vector<1x1x128xf32>,
    %c0_12 = arith.constant 0 : index
    %c0_13 = arith.constant 0 : index
    %c0_14 = arith.constant 0 : index
    %16 = vector.load %arg5[%c0_12, %c0_13, %c0_14] : memref<1x3x128xf32, #tpu.memory_space<vmem>>, vector<1x1x128xf32>
    %17 = vector.shape_cast %16 : vector<1x1x128xf32> to vector<128xf32>
    %cst_15 = arith.constant dense<0.000000e+00> : vector<128xf32>
    %18 = vector.multi_reduction <add>, %8, %cst_15 [0] : vector<4x128xf32> to vector<128xf32>
    %19 = arith.addf %17, %18 : vector<128xf32>
    %c0_16 = arith.constant 0 : index
    %c0_17 = arith.constant 0 : index
    %c0_18 = arith.constant 0 : index
    %20 = vector.load %arg5[%c0_16, %c0_17, %c0_18] : memref<1x3x128xf32, #tpu.memory_space<vmem>>, vector<1x1x128xf32>
    %21 = vector.shape_cast %20 : vector<1x1x128xf32> to vector<128xf32>
    %22 = vector.shape_cast %19 : vector<128xf32> to vector<1x1x128xf32>
    tpu.vector_store %arg5[%c0_16, %c0_17, %c0_18], %22 {strides = array<i32>} : memref<1x3x128xf32, #tpu.memory_space<vmem>>, vector<1x1x128xf32>,
    %c1 = arith.constant 1 : index
    %c0_19 = arith.constant 0 : index
    %c0_20 = arith.constant 0 : index
    %23 = vector.load %arg2[%c1, %c0_19, %c0_20] : memref<3x4x128xi8, #tpu.memory_space<vmem>>, vector<1x4x128xi8>
    %24 = vector.shape_cast %23 : vector<1x4x128xi8> to vector<4x128xi8>
    %25 = arith.sitofp %24 : vector<4x128xi8> to vector<4x128xf32>
    %c1_21 = arith.constant 1 : index
    %c0_22 = arith.constant 0 : index
    %c0_23 = arith.constant 0 : index
    %26 = vector.load %arg3[%c1_21, %c0_22, %c0_23] : memref<3x4x128xi8, #tpu.memory_space<vmem>>, vector<1x4x128xi8>
    %27 = vector.shape_cast %26 : vector<1x4x128xi8> to vector<4x128xi8>
    %28 = arith.sitofp %27 : vector<4x128xi8> to vector<4x128xf32>
    %c0_24 = arith.constant 0 : index
    %c1_25 = arith.constant 1 : index
    %c0_26 = arith.constant 0 : index
    %29 = vector.load %arg4[%c0_24, %c1_25, %c0_26] : memref<1x3x128xf32, #tpu.memory_space<vmem>>, vector<1x1x128xf32>
    %30 = vector.shape_cast %29 : vector<1x1x128xf32> to vector<128xf32>
    %cst_27 = arith.constant dense<0.000000e+00> : vector<128xf32>
    %31 = vector.multi_reduction <add>, %25, %cst_27 [0] : vector<4x128xf32> to vector<128xf32>
    %32 = arith.addf %30, %31 : vector<128xf32>
    %c0_28 = arith.constant 0 : index
    %c1_29 = arith.constant 1 : index
    %c0_30 = arith.constant 0 : index
    %33 = vector.load %arg4[%c0_28, %c1_29, %c0_30] : memref<1x3x128xf32, #tpu.memory_space<vmem>>, vector<1x1x128xf32>
    %34 = vector.shape_cast %33 : vector<1x1x128xf32> to vector<128xf32>
    %35 = vector.shape_cast %32 : vector<128xf32> to vector<1x1x128xf32>
    tpu.vector_store %arg4[%c0_28, %c1_29, %c0_30], %35 {strides = array<i32>} : memref<1x3x128xf32, #tpu.memory_space<vmem>>, vector<1x1x128xf32>,
    %c0_31 = arith.constant 0 : index
    %c1_32 = arith.constant 1 : index
    %c0_33 = arith.constant 0 : index
    %36 = vector.load %arg5[%c0_31, %c1_32, %c0_33] : memref<1x3x128xf32, #tpu.memory_space<vmem>>, vector<1x1x128xf32>
    %37 = vector.shape_cast %36 : vector<1x1x128xf32> to vector<128xf32>
    %cst_34 = arith.constant dense<0.000000e+00> : vector<128xf32>
    %38 = vector.multi_reduction <add>, %28, %cst_34 [0] : vector<4x128xf32> to vector<128xf32>
    %39 = arith.addf %37, %38 : vector<128xf32>
    %c0_35 = arith.constant 0 : index
    %c1_36 = arith.constant 1 : index
    %c0_37 = arith.constant 0 : index
    %40 = vector.load %arg5[%c0_35, %c1_36, %c0_37] : memref<1x3x128xf32, #tpu.memory_space<vmem>>, vector<1x1x128xf32>
    %41 = vector.shape_cast %40 : vector<1x1x128xf32> to vector<128xf32>
    %42 = vector.shape_cast %39 : vector<128xf32> to vector<1x1x128xf32>
    tpu.vector_store %arg5[%c0_35, %c1_36, %c0_37], %42 {strides = array<i32>} : memref<1x3x128xf32, #tpu.memory_space<vmem>>, vector<1x1x128xf32>,
    %c2 = arith.constant 2 : index
    %c0_38 = arith.constant 0 : index
    %c0_39 = arith.constant 0 : index
    %43 = vector.load %arg2[%c2, %c0_38, %c0_39] : memref<3x4x128xi8, #tpu.memory_space<vmem>>, vector<1x4x128xi8>
    %44 = vector.shape_cast %43 : vector<1x4x128xi8> to vector<4x128xi8>
    %45 = arith.sitofp %44 : vector<4x128xi8> to vector<4x128xf32>
    %c2_40 = arith.constant 2 : index
    %c0_41 = arith.constant 0 : index
    %c0_42 = arith.constant 0 : index
    %46 = vector.load %arg3[%c2_40, %c0_41, %c0_42] : memref<3x4x128xi8, #tpu.memory_space<vmem>>, vector<1x4x128xi8>
    %47 = vector.shape_cast %46 : vector<1x4x128xi8> to vector<4x128xi8>
    %48 = arith.sitofp %47 : vector<4x128xi8> to vector<4x128xf32>
    %c0_43 = arith.constant 0 : index
    %c2_44 = arith.constant 2 : index
    %c0_45 = arith.constant 0 : index
    %49 = vector.load %arg4[%c0_43, %c2_44, %c0_45] : memref<1x3x128xf32, #tpu.memory_space<vmem>>, vector<1x1x128xf32>
    %50 = vector.shape_cast %49 : vector<1x1x128xf32> to vector<128xf32>
    %cst_46 = arith.constant dense<0.000000e+00> : vector<128xf32>
    %51 = vector.multi_reduction <add>, %45, %cst_46 [0] : vector<4x128xf32> to vector<128xf32>
    %52 = arith.addf %50, %51 : vector<128xf32>
    %c0_47 = arith.constant 0 : index
    %c2_48 = arith.constant 2 : index
    %c0_49 = arith.constant 0 : index
    %53 = vector.load %arg4[%c0_47, %c2_48, %c0_49] : memref<1x3x128xf32, #tpu.memory_space<vmem>>, vector<1x1x128xf32>
    %54 = vector.shape_cast %53 : vector<1x1x128xf32> to vector<128xf32>
    %55 = vector.shape_cast %52 : vector<128xf32> to vector<1x1x128xf32>
    tpu.vector_store %arg4[%c0_47, %c2_48, %c0_49], %55 {strides = array<i32>} : memref<1x3x128xf32, #tpu.memory_space<vmem>>, vector<1x1x128xf32>,
    %c0_50 = arith.constant 0 : index
    %c2_51 = arith.constant 2 : index
    %c0_52 = arith.constant 0 : index
    %56 = vector.load %arg5[%c0_50, %c2_51, %c0_52] : memref<1x3x128xf32, #tpu.memory_space<vmem>>, vector<1x1x128xf32>
    %57 = vector.shape_cast %56 : vector<1x1x128xf32> to vector<128xf32>
    %cst_53 = arith.constant dense<0.000000e+00> : vector<128xf32>
    %58 = vector.multi_reduction <add>, %48, %cst_53 [0] : vector<4x128xf32> to vector<128xf32>
    %59 = arith.addf %57, %58 : vector<128xf32>
    %c0_54 = arith.constant 0 : index
    %c2_55 = arith.constant 2 : index
    %c0_56 = arith.constant 0 : index
    %60 = vector.load %arg5[%c0_54, %c2_55, %c0_56] : memref<1x3x128xf32, #tpu.memory_space<vmem>>, vector<1x1x128xf32>
    %61 = vector.shape_cast %60 : vector<1x1x128xf32> to vector<128xf32>
    %62 = vector.shape_cast %59 : vector<128xf32> to vector<1x1x128xf32>
    tpu.vector_store %arg5[%c0_54, %c2_55, %c0_56], %62 {strides = array<i32>} : memref<1x3x128xf32, #tpu.memory_space<vmem>>, vector<1x1x128xf32>,
    return
  }
  func.func @transform_0(%arg0: i32, %arg1: i32) -> (i32, i32, i32) {
    %c1_i32 = arith.constant 1 : i32
    %0 = arith.muli %arg0, %c1_i32 : i32
    %1 = arith.addi %0, %arg1 : i32
    %c0_i32 = arith.constant 0 : i32
    %2 = arith.minsi %1, %c0_i32 : i32
    %c0_i32_0 = arith.constant 0 : i32
    %c0_i32_1 = arith.constant 0 : i32
    %c0_i32_2 = arith.constant 0 : i32
    return %c0_i32_0, %2, %c0_i32_1 : i32, i32, i32
  }
  func.func @transform_1(%arg0: i32, %arg1: i32) -> (i32, i32, i32) {
    %c1_i32 = arith.constant 1 : i32
    %0 = arith.muli %arg0, %c1_i32 : i32
    %1 = arith.addi %0, %arg1 : i32
    %c0_i32 = arith.constant 0 : i32
    %2 = arith.minsi %1, %c0_i32 : i32
    %c0_i32_0 = arith.constant 0 : i32
    %c0_i32_1 = arith.constant 0 : i32
    %c0_i32_2 = arith.constant 0 : i32
    return %c0_i32_0, %2, %c0_i32_1 : i32, i32, i32
  }
  func.func @transform_2(%arg0: i32, %arg1: i32) -> (i32, i32, i32) {
    %c0_i32 = arith.constant 0 : i32
    %c0_i32_0 = arith.constant 0 : i32
    %c0_i32_1 = arith.constant 0 : i32
    return %arg0, %c0_i32, %c0_i32_0 : i32, i32, i32
  }
  func.func @transform_3(%arg0: i32, %arg1: i32) -> (i32, i32, i32) {
    %c0_i32 = arith.constant 0 : i32
    %c0_i32_0 = arith.constant 0 : i32
    %c0_i32_1 = arith.constant 0 : i32
    return %arg0, %c0_i32, %c0_i32_0 : i32, i32, i32
  }
}

</mosaic_0001>

<llo_original>
// kernel: tpu_custom_call.1
$region0: #{tpu_custom_call.1}
  #allocation0 [shape = 'u32[]', space=smem, size = 0x4, offset = 0x4, fixed_abs, tag = 'smem constant byte address 0x4 - core index']
  #allocation1 [shape = 'u32[144,128]{1,0:T(1,128)}', space=vmem, size = 0x12000, scoped, tag = 'internal scratch']
  %s0 = inlined_call_operand.hbm [shape: s8[3,4,128], index: 0, kind: input, shape index: {}]
  %s1 = inlined_call_operand.vmem [shape: s8[3,4,128], index: 1, kind: input, shape index: {}]
  %s2 = inlined_call_operand.vmem [shape: f32[1,3,128], index: 2, kind: output, shape index: {0}]
  %s3 = inlined_call_operand.vmem [shape: f32[1,3,128], index: 3, kind: output, shape index: {1}]
  %4 = xla_tuple %s2, %s3
  %s5 = sld [smem:[#allocation0]]
  $region34: #{tpu_custom_call.1} parent=0
    _
  %s7 = ssub.s32 1, %s5
  %s8 = scalar_select 0, %s7, %s5
  $region1: #{tpu_custom_call.1} parent=0
    #allocation2 [shape = 'u8[1536]{0}', space=vmem, size = 0x800, scoped, tag = 'input window, operand 0, single buffered']
    #allocation3 [shape = 's32[1]{0}', space=sflag, size = 0x4, scoped, tag = 'scoped memory for tpu_custom_call.1']
    %9 = vsyncpa [#allocation3], 0
    // Predicated region
    $region2: #{tpu_custom_call.1} parent=1 // pred_check
      _
    $region3: #{tpu_custom_call.1} parent=1 // pred_check_branch
      %11 = sbr.rel (0) target = $region5
    $region4: #{tpu_custom_call.1} parent=1 // pred_region
      %s12 = sadd.s32 0, 0
      %p13 = scmp.lt.s32.totalorder %s12, 0
      %s14 = scalar_select %p13, %s12, 0
      %s16 = ssub.s32 48, 48
      %17 = vsyncadd [#allocation3], %s16
      %s18 = smul.addr %s14, 16
      %s19 = scalar_lea.hbm %s0, %s18
      %s20 = sshll.u32 [#allocation2], 4
      %s21 = int_to_ptr.vmem [resolvable:$true] %s20
      %26 = dma.hbm_to_vmem [thread:$0]  %s19, 48, %s21, [#allocation3], 16, 16, 1
    $region5: #{tpu_custom_call.1} parent=1 // pred_fallthru
      _
    // Predicated region
    $region6: #{tpu_custom_call.1} parent=1 // pred_check
      _
    $region7: #{tpu_custom_call.1} parent=1 // pred_check_branch
      %28 = sbr.rel (0) target = $region9
    $region8: #{tpu_custom_call.1} parent=1 // pred_region
      %s29 = sadd.s32 0, 0
      %p30 = scmp.lt.s32.totalorder %s29, 0
      %s31 = scalar_select %p30, %s29, 0
      %p32 = scmp.lt.s32.totalorder %s31, 0
      %s33 = scalar_select %p32, %s31, 0
      %s34 = scalar_lea.vmem %s1, %s33
      %s35 = sadd.s32 0, 0
      %p36 = scmp.lt.s32.totalorder %s35, 0
      %s37 = scalar_select %p36, %s35, 0
    $region9: #{tpu_custom_call.1} parent=1 // pred_fallthru
      _
    // Predicated region
    $region10: #{tpu_custom_call.1} parent=1 // pred_check
      _
    $region11: #{tpu_custom_call.1} parent=1 // pred_check_branch
      %39 = sbr.rel (0) target = $region13
    $region12: #{tpu_custom_call.1} parent=1 // pred_region
      %40 = dma.done [#allocation3], 48
    $region13: #{tpu_custom_call.1} parent=1 // pred_fallthru
      _
    %s41 = sadd.s32 0, 0
    %p42 = scmp.lt.s32.totalorder %s41, 0
    %s43 = scalar_select %p42, %s41, 0
    %p44 = scmp.lt.s32.totalorder %s43, 0
    %s45 = scalar_select %p44, %s43, 0
    %s46 = scalar_lea.vmem %s1, %s45
    %s47 = sadd.s32 0, 0
    %p48 = scmp.lt.s32.totalorder %s47, 0
    %s49 = scalar_select %p48, %s47, 0
    %s50 = sadd.s32 0, 0
    %p51 = scmp.lt.s32.totalorder %s50, 0
    %s52 = scalar_select %p51, %s50, 0
    %p53 = scmp.lt.s32.totalorder %s52, 0
    %s54 = scalar_select %p53, %s52, 0
    %s55 = scalar_lea.vmem %s1, %s54
    %s56 = sadd.s32 0, 0
    %p57 = scmp.lt.s32.totalorder %s56, 0
    %s58 = scalar_select %p57, %s56, 0
    %p59 = scmp.eq.s32.totalorder 0, 0
    // Predicated region
    $region14: #{tpu_custom_call.1} parent=1 // pred_check
      %p60 = pneg %p59
    $region15: #{tpu_custom_call.1} parent=1 // pred_check_branch
      %62 = sbr.rel (%p60) target = $region17
    $region16: #{tpu_custom_call.1} parent=1 // pred_region
      %63 = vst [vmem:[%s2] sm:$0x7] 0.0
      %64 = vst [vmem:[%s3] sm:$0x7] 0.0
    $region17: #{tpu_custom_call.1} parent=1 // pred_fallthru
      _
    %v65 = vld [vmem:[#allocation2] sm:$0x1]
    %v66 = vunpack.c.0.s8 %v65
    %v67 = vcvt.s32.f32 %v66
    %v68 = vld [vmem:[%s55] sm:$0x1]
    %v69 = vunpack.c.0.s8 %v68
    %v70 = vcvt.s32.f32 %v69
    %v71 = vld [vmem:[%s2] sm:$0x1]
    %vm72 = vcmask 1043456
    %v73 = vsel %vm72, %v67, 0.0
    %v74 = vrot.slane %v73, 4
    %v75 = vadd.f32 %v73, %v74
    %v76 = vrot.slane %v75, 2
    %v77 = vadd.f32 %v75, %v76
    %v78 = vrot.slane %v77, 1
    %v79 = vadd.f32 %v77, %v78
    %v80 = vadd.f32 %v71, %v79
    %81 = vst [vmem:[%s2] sm:$0x1] %v80
    %v82 = vld [vmem:[%s3] sm:$0x1]
    %v83 = vsel %vm72, %v70, 0.0
    %v84 = vrot.slane %v83, 4
    %v85 = vadd.f32 %v83, %v84
    %v86 = vrot.slane %v85, 2
    %v87 = vadd.f32 %v85, %v86
    %v88 = vrot.slane %v87, 1
    %v89 = vadd.f32 %v87, %v88
    %v90 = vadd.f32 %v82, %v89
    %91 = vst [vmem:[%s3] sm:$0x1] %v90
    %s92 = scalar_lea.vmem [#allocation2], 1
    %v93 = vld [vmem:[%s92] sm:$0x1]
    %v94 = vunpack.c.0.s8 %v93
    %v95 = vcvt.s32.f32 %v94
    %s96 = scalar_lea.vmem %s55, 1
    %v97 = vld [vmem:[%s96] sm:$0x1]
    %v98 = vunpack.c.0.s8 %v97
    %v99 = vcvt.s32.f32 %v98
    %v100 = vld [vmem:[%s2 + $0x1] sm:$0x1]
    %v101 = vsel %vm72, %v95, 0.0
    %v102 = vrot.slane %v101, 4
    %v103 = vadd.f32 %v101, %v102
    %v104 = vrot.slane %v103, 2
    %v105 = vadd.f32 %v103, %v104
    %v106 = vrot.slane %v105, 1
    %v107 = vadd.f32 %v105, %v106
    %v108 = vadd.f32 %v100, %v107
    %109 = vst [vmem:[%s2 + $0x1] sm:$0x1] %v108
    %v110 = vld [vmem:[%s3 + $0x1] sm:$0x1]
    %v111 = vsel %vm72, %v99, 0.0
    %v112 = vrot.slane %v111, 4
    %v113 = vadd.f32 %v111, %v112
    %v114 = vrot.slane %v113, 2
    %v115 = vadd.f32 %v113, %v114
    %v116 = vrot.slane %v115, 1
    %v117 = vadd.f32 %v115, %v116
    %v118 = vadd.f32 %v110, %v117
    %119 = vst [vmem:[%s3 + $0x1] sm:$0x1] %v118
    %s120 = scalar_lea.vmem [#allocation2], 2
    %v121 = vld [vmem:[%s120] sm:$0x1]
    %v122 = vunpack.c.0.s8 %v121
    %v123 = vcvt.s32.f32 %v122
    %s124 = scalar_lea.vmem %s55, 2
    %v125 = vld [vmem:[%s124] sm:$0x1]
    %v126 = vunpack.c.0.s8 %v125
    %v127 = vcvt.s32.f32 %v126
    %v128 = vld [vmem:[%s2 + $0x2] sm:$0x1]
    %v129 = vsel %vm72, %v123, 0.0
    %v130 = vrot.slane %v129, 4
    %v131 = vadd.f32 %v129, %v130
    %v132 = vrot.slane %v131, 2
    %v133 = vadd.f32 %v131, %v132
    %v134 = vrot.slane %v133, 1
    %v135 = vadd.f32 %v133, %v134
    %v136 = vadd.f32 %v128, %v135
    %137 = vst [vmem:[%s2 + $0x2] sm:$0x1] %v136
    %v138 = vld [vmem:[%s3 + $0x2] sm:$0x1]
    %v139 = vsel %vm72, %v127, 0.0
    %v140 = vrot.slane %v139, 4
    %v141 = vadd.f32 %v139, %v140
    %v142 = vrot.slane %v141, 2
    %v143 = vadd.f32 %v141, %v142
    %v144 = vrot.slane %v143, 1
    %v145 = vadd.f32 %v143, %v144
    %v146 = vadd.f32 %v138, %v145
    %147 = vst [vmem:[%s3 + $0x2] sm:$0x1] %v146
    // Predicated region
    $region18: #{tpu_custom_call.1} parent=1 // pred_check
      _
    $region19: #{tpu_custom_call.1} parent=1 // pred_check_branch
      %149 = sbr.rel (0) target = $region21
    $region20: #{tpu_custom_call.1} parent=1 // pred_region
      _
    $region21: #{tpu_custom_call.1} parent=1 // pred_fallthru
      _
    // Predicated region
    $region22: #{tpu_custom_call.1} parent=1 // pred_check
      _
    $region23: #{tpu_custom_call.1} parent=1 // pred_check_branch
      %151 = sbr.rel (0) target = $region25
    $region24: #{tpu_custom_call.1} parent=1 // pred_region
      _
    $region25: #{tpu_custom_call.1} parent=1 // pred_fallthru
      _
    // Predicated region
    $region26: #{tpu_custom_call.1} parent=1 // pred_check
      _
    $region27: #{tpu_custom_call.1} parent=1 // pred_check_branch
      %153 = sbr.rel (0) target = $region29
    $region28: #{tpu_custom_call.1} parent=1 // pred_region
      _
    $region29: #{tpu_custom_call.1} parent=1 // pred_fallthru
      _
    // Predicated region
    $region30: #{tpu_custom_call.1} parent=1 // pred_check
      _
    $region31: #{tpu_custom_call.1} parent=1 // pred_check_branch
      %155 = sbr.rel (0) target = $region33
    $region32: #{tpu_custom_call.1} parent=1 // pred_region
      _
    $region33: #{tpu_custom_call.1} parent=1 // pred_fallthru
      _
    %156 = vsyncpa [#allocation3], 1

</llo_original>
